<compile_context>
chip_gen: v6e
topology: v6e:2x2x1
jax: 0.10.0
libtpu: 0.0.40
codegen_flags: <defaults>
</compile_context>

<pallas_src>
import jax
import jax.numpy as jnp
from jax.experimental import pallas as pl
from jax.experimental.pallas import tpu as pltpu


def _round_up(x, m):
    return ((x + m - 1) // m) * m


def _actor_kernel(lim_ref, obs_ref, w0_ref, b0_ref, w1_ref, b1_ref,
                  w2_ref, b2_ref, out_ref):
    act_limit = lim_ref[0]                           # f32 scalar from SMEM
    obs = obs_ref[...].astype(jnp.bfloat16)          # (block_b, obs_dim)

    # Layer 0: Linear(obs_dim -> H) + ReLU.  K = obs_dim (unpadded): the MXU
    # lowering pads the contraction dim with zeros internally -> exact.
    h1f = jnp.dot(obs, w0_ref[...], preferred_element_type=jnp.float32)
    h1f = jnp.maximum(h1f + b0_ref[...], 0.0)
    h1 = h1f.astype(jnp.bfloat16)                    # only bf16 h1 stays live

    # Layer 1: Linear(H -> H) + ReLU.
    h2f = jnp.dot(h1, w1_ref[...], preferred_element_type=jnp.float32)
    h2f = jnp.maximum(h2f + b1_ref[...], 0.0)

    # Final layer: addition skip connection, input = h1 + h2.
    skip = (h1.astype(jnp.float32) + h2f).astype(jnp.bfloat16)
    y = jnp.dot(skip, w2_ref[...], preferred_element_type=jnp.float32)
    out_ref[...] = (act_limit * jnp.tanh(y + b2_ref[...])).astype(out_ref.dtype)


def _choose_block_b(batch):
    # batch <= 1024: one grid step; block == full batch dim is always a legal
    # block shape and needs zero row padding -> no per-step overhead.
    if batch <= 1024:
        return batch
    # Larger batches: <= 2048-row tiles (amortize the ~0.35us/step overhead),
    # multiples of 256 (fill 256-wide MXU passes on v6e/v7x, 128 on v5e), and
    # an even grid length so the "parallel" batch axis splits evenly across
    # v7x's two TensorCores.
    steps = max(2, -(-batch // 2048))
    steps += steps % 2
    return _round_up(-(-batch // steps), 256)


def _vmem_limit_bytes(budget_bytes):
    # Generation-aware cap: 128 MiB physical on v5e/v6e, 64 MiB on v7x.
    try:
        cap = pltpu.get_tpu_info().vmem_capacity_bytes
    except Exception:
        cap = 64 << 20
    return int(min(max(int(budget_bytes * 1.5), 8 << 20), int(0.75 * cap)))


def prepare_actor_params(params):
    """Pad + cast the weights/biases ONCE (call at parameter-init time).

    W0 keeps its unpadded input dim (= obs_dim) so obs never needs feature
    padding; all output dims are padded to lane-dense multiples of 128.
    Returns (prepared_params, (obs_dim, hidden, act_dim)).
    """
    w0, b0, w1, b1, w2, b2 = params
    w0 = jnp.asarray(w0, jnp.float32)
    w1 = jnp.asarray(w1, jnp.float32)
    w2 = jnp.asarray(w2, jnp.float32)
    obs_dim, hidden = w0.shape
    act_dim = w2.shape[1]
    assert w1.shape == (hidden, hidden), \
        "addition skip connection requires equal hidden sizes"
    # TODO(synk): only the default 2-hidden-layer config is implemented; the
    # general N-layer running-sum skip connection is not covered here.

    hid_p = _round_up(max(hidden, 128), 128)
    act_p = _round_up(max(act_dim, 128), 128)
    f32, bf16 = jnp.float32, jnp.bfloat16

    w0p = jnp.pad(w0, ((0, 0), (0, hid_p - hidden))).astype(bf16)
    w1p = jnp.pad(w1, ((0, hid_p - hidden), (0, hid_p - hidden))).astype(bf16)
    w2p = jnp.pad(w2, ((0, hid_p - hidden), (0, act_p - act_dim))).astype(bf16)
    b0p = jnp.pad(jnp.asarray(b0, f32).reshape(1, -1), ((0, 0), (0, hid_p - hidden)))
    b1p = jnp.pad(jnp.asarray(b1, f32).reshape(1, -1), ((0, 0), (0, hid_p - hidden)))
    b2p = jnp.pad(jnp.asarray(b2, f32).reshape(1, -1), ((0, 0), (0, act_p - act_dim)))
    return (w0p, b0p, w1p, b1p, w2p, b2p), (obs_dim, hidden, act_dim)


def addition_skipconn_mlp_actor(obs, prepared_params, dims, act_limit, *,
                                block_b=None, out_dtype=jnp.float32):
    """Pallas TPU forward for AdditionSkipConnMLPActor (two hidden layers)."""
    w0p, b0p, w1p, b1p, w2p, b2p = prepared_params
    obs_dim, hidden, act_dim = dims
    batch = obs.shape[0]
    assert obs.shape[1] == obs_dim
    hid_p = w0p.shape[1]
    act_p = w2p.shape[1]

    if block_b is None:
        block_b = _choose_block_b(batch)
    block_b = int(block_b)
    if block_b != batch:
        block_b = max(8, _round_up(block_b, 8))      # sublane-aligned tiles
    batch_p = batch if block_b == batch else _round_up(batch, block_b)

    obs_in = obs.astype(jnp.float32)
    if batch_p != batch:
        obs_in = jnp.pad(obs_in, ((0, batch_p - batch), (0, 0)))  # zero rows, sliced off
    lim = jnp.asarray([act_limit], dtype=jnp.float32)             # SMEM scalar

    grid = (batch_p // block_b,)

    # VMEM budget: double-buffered obs/out tiles, resident (double-buffered)
    # weights/biases, and live activations; 1.5x headroom, per-gen cap.
    io_bytes = 2 * block_b * obs_dim * 4 + 2 * block_b * act_p * 2
    w_bytes = 2 * ((obs_dim * hid_p + hid_p * hid_p + hid_p * act_p) * 2
                   + (2 * hid_p + act_p) * 4)
    act_bytes = 3 * block_b * hid_p * 4 + block_b * act_p * 4
    vmem_limit = _vmem_limit_bytes(io_bytes + w_bytes + act_bytes)

    out = pl.pallas_call(
        _actor_kernel,
        out_shape=jax.ShapeDtypeStruct((batch_p, act_p), jnp.bfloat16),
        grid_spec=pltpu.PrefetchScalarGridSpec(
            num_scalar_prefetch=0,
            grid=grid,
            in_specs=[
                pl.BlockSpec(memory_space=pltpu.MemorySpace.SMEM),   # act_limit
                pl.BlockSpec((block_b, obs_dim), lambda i: (i, 0)),  # obs tile (unpadded feats)
                pl.BlockSpec((obs_dim, hid_p), lambda i: (0, 0)),    # W0 (resident)
                pl.BlockSpec((1, hid_p), lambda i: (0, 0)),          # b0
                pl.BlockSpec((hid_p, hid_p), lambda i: (0, 0)),      # W1
                pl.BlockSpec((1, hid_p), lambda i: (0, 0)),          # b1
                pl.BlockSpec((hid_p, act_p), lambda i: (0, 0)),      # W2
                pl.BlockSpec((1, act_p), lambda i: (0, 0)),          # b2
            ],
            out_specs=pl.BlockSpec((block_b, act_p), lambda i: (i, 0)),
        ),
        compiler_params=pltpu.CompilerParams(
            dimension_semantics=("parallel",),
            vmem_limit_bytes=vmem_limit),
    )(lim, obs_in, w0p, b0p, w1p, b1p, w2p, b2p)

    return out[:batch, :act_dim].astype(out_dtype)


def _init_linear(kw, kb, fan_in, fan_out):
    # PyTorch nn.Linear default init: U(-1/sqrt(fan_in), 1/sqrt(fan_in))
    bound = 1.0 / float(fan_in) ** 0.5
    w = jax.random.uniform(kw, (fan_in, fan_out), jnp.float32, -bound, bound)
    b = jax.random.uniform(kb, (1, fan_out), jnp.float32, -bound, bound)
    return w, b


if __name__ == "__main__":
    batch, obs_dim, act_dim, hidden = 64, 17, 6, 256
    act_limit = 2.0

    key = jax.random.PRNGKey(0)
    keys = jax.random.split(key, 7)
    w0, b0 = _init_linear(keys[0], keys[1], obs_dim, hidden)
    w1, b1 = _init_linear(keys[2], keys[3], hidden, hidden)
    w2, b2 = _init_linear(keys[4], keys[5], hidden, act_dim)
    obs = jax.random.normal(keys[6], (batch, obs_dim), jnp.float32)

    prepared, dims = prepare_actor_params((w0, b0, w1, b1, w2, b2))
    out = addition_skipconn_mlp_actor(obs, prepared, dims, act_limit)
    out = jax.block_until_ready(out)
    assert out.shape == (batch, act_dim)
    assert out.dtype == jnp.float32

    # Reference mimicking the kernel arithmetic (bf16 operands / bf16 output,
    # f32 accumulation).
    def _bf(x):
        return x.astype(jnp.bfloat16).astype(jnp.float32)

    h1f = jnp.maximum(_bf(obs) @ _bf(w0) + b0, 0.0)
    h1b = _bf(h1f)
    h2f = jnp.maximum(h1b @ _bf(w1) + b1, 0.0)
    skip = _bf(h1b + h2f)
    ref_bf16 = _bf(act_limit * jnp.tanh(skip @ _bf(w2) + b2))
    assert jnp.allclose(out, ref_bf16, atol=1.5e-2, rtol=1.5e-2), \
        "Pallas kernel mismatch vs bf16 reference"

    # Full-precision reference (looser tolerance: bf16 operands/output in kernel).
    h1 = jnp.maximum(obs @ w0 + b0, 0.0)
    h2 = jnp.maximum(h1 @ w1 + b1, 0.0)
    ref_f32 = act_limit * jnp.tanh((h1 + h2) @ w2 + b2)
    assert jnp.allclose(out, ref_f32, atol=5e-2, rtol=5e-2), \
        "Pallas kernel mismatch vs f32 reference"

    print("KERNEL_OK")
</pallas_src>

<mosaic_0001>
module attributes {stable_mosaic.version = 11 : i64} {
  func.func @_actor_kernel(%arg0: i32, %arg1: memref<1xf32, #tpu.memory_space<smem>>, %arg2: memref<64x17xf32, #tpu.memory_space<vmem>>, %arg3: memref<17x256xbf16, #tpu.memory_space<vmem>>, %arg4: memref<1x256xf32, #tpu.memory_space<vmem>>, %arg5: memref<256x256xbf16, #tpu.memory_space<vmem>>, %arg6: memref<1x256xf32, #tpu.memory_space<vmem>>, %arg7: memref<256x128xbf16, #tpu.memory_space<vmem>>, %arg8: memref<1x128xf32, #tpu.memory_space<vmem>>, %arg9: memref<64x128xbf16, #tpu.memory_space<vmem>>) attributes {dimension_semantics = [#tpu.dimension_semantics<parallel>], iteration_bounds = array<i64: 1>, scalar_prefetch = 0 : i64, scratch_operands = 0 : i64, tpu.core_type = #tpu.core_type<tc>, window_params = [{transform_indices = @transform_0, window_bounds = array<i64: 1>}, {transform_indices = @transform_1, window_bounds = array<i64: 64, 17>}, {pipeline_mode = #tpu.pipeline_mode<synchronous>, transform_indices = @transform_2, window_bounds = array<i64: 17, 256>}, {pipeline_mode = #tpu.pipeline_mode<synchronous>, transform_indices = @transform_3, window_bounds = array<i64: 1, 256>}, {pipeline_mode = #tpu.pipeline_mode<synchronous>, transform_indices = @transform_4, window_bounds = array<i64: 256, 256>}, {pipeline_mode = #tpu.pipeline_mode<synchronous>, transform_indices = @transform_5, window_bounds = array<i64: 1, 256>}, {pipeline_mode = #tpu.pipeline_mode<synchronous>, transform_indices = @transform_6, window_bounds = array<i64: 256, 128>}, {pipeline_mode = #tpu.pipeline_mode<synchronous>, transform_indices = @transform_7, window_bounds = array<i64: 1, 128>}, {transform_indices = @transform_8, window_bounds = array<i64: 64, 128>}]} {
    %c0 = arith.constant 0 : index
    %0 = memref.load %arg1[%c0] : memref<1xf32, #tpu.memory_space<smem>>
    %c0_0 = arith.constant 0 : index
    %c0_1 = arith.constant 0 : index
    %1 = vector.load %arg2[%c0_0, %c0_1] : memref<64x17xf32, #tpu.memory_space<vmem>>, vector<64x17xf32>
    %2 = arith.truncf %1 : vector<64x17xf32> to vector<64x17xbf16>
    %c0_2 = arith.constant 0 : index
    %c0_3 = arith.constant 0 : index
    %3 = vector.load %arg3[%c0_2, %c0_3] : memref<17x256xbf16, #tpu.memory_space<vmem>>, vector<17x256xbf16>
    %cst = arith.constant dense<0.000000e+00> : vector<64x256xf32>
    %4 = tpu.matmul %2, %3, %cst {dimension_numbers = #tpu.dot_dimension_numbers<[1], [0], [0], [1], [0, 0, 1, 1], [], []>} : vector<64x17xbf16>, vector<17x256xbf16>, vector<64x256xf32> -> vector<64x256xf32>
    %c0_4 = arith.constant 0 : index
    %c0_5 = arith.constant 0 : index
    %5 = vector.load %arg4[%c0_4, %c0_5] : memref<1x256xf32, #tpu.memory_space<vmem>>, vector<1x256xf32>
    %6 = vector.broadcast %5 : vector<1x256xf32> to vector<64x256xf32>
    %7 = arith.addf %4, %6 : vector<64x256xf32>
    %cst_6 = arith.constant 0.000000e+00 : f32
    %8 = vector.broadcast %cst_6 : f32 to vector<64x256xf32>
    %9 = arith.maximumf %7, %8 : vector<64x256xf32>
    %10 = arith.truncf %9 : vector<64x256xf32> to vector<64x256xbf16>
    %c0_7 = arith.constant 0 : index
    %c0_8 = arith.constant 0 : index
    %11 = vector.load %arg5[%c0_7, %c0_8] : memref<256x256xbf16, #tpu.memory_space<vmem>>, vector<256x256xbf16>
    %cst_9 = arith.constant dense<0.000000e+00> : vector<64x256xf32>
    %12 = tpu.matmul %10, %11, %cst_9 {dimension_numbers = #tpu.dot_dimension_numbers<[1], [0], [0], [1], [0, 0, 1, 1], [], []>} : vector<64x256xbf16>, vector<256x256xbf16>, vector<64x256xf32> -> vector<64x256xf32>
    %c0_10 = arith.constant 0 : index
    %c0_11 = arith.constant 0 : index
    %13 = vector.load %arg6[%c0_10, %c0_11] : memref<1x256xf32, #tpu.memory_space<vmem>>, vector<1x256xf32>
    %14 = vector.broadcast %13 : vector<1x256xf32> to vector<64x256xf32>
    %15 = arith.addf %12, %14 : vector<64x256xf32>
    %cst_12 = arith.constant 0.000000e+00 : f32
    %16 = vector.broadcast %cst_12 : f32 to vector<64x256xf32>
    %17 = arith.maximumf %15, %16 : vector<64x256xf32>
    %18 = arith.extf %10 : vector<64x256xbf16> to vector<64x256xf32>
    %19 = arith.addf %18, %17 : vector<64x256xf32>
    %20 = arith.truncf %19 : vector<64x256xf32> to vector<64x256xbf16>
    %c0_13 = arith.constant 0 : index
    %c0_14 = arith.constant 0 : index
    %21 = vector.load %arg7[%c0_13, %c0_14] : memref<256x128xbf16, #tpu.memory_space<vmem>>, vector<256x128xbf16>
    %cst_15 = arith.constant dense<0.000000e+00> : vector<64x128xf32>
    %22 = tpu.matmul %20, %21, %cst_15 {dimension_numbers = #tpu.dot_dimension_numbers<[1], [0], [0], [1], [0, 0, 1, 1], [], []>} : vector<64x256xbf16>, vector<256x128xbf16>, vector<64x128xf32> -> vector<64x128xf32>
    %c0_16 = arith.constant 0 : index
    %c0_17 = arith.constant 0 : index
    %23 = vector.load %arg8[%c0_16, %c0_17] : memref<1x128xf32, #tpu.memory_space<vmem>>, vector<1x128xf32>
    %24 = vector.broadcast %23 : vector<1x128xf32> to vector<64x128xf32>
    %25 = arith.addf %22, %24 : vector<64x128xf32>
    %26 = math.tanh %25 : vector<64x128xf32>
    %27 = vector.broadcast %0 : f32 to vector<64x128xf32>
    %28 = arith.mulf %27, %26 : vector<64x128xf32>
    %29 = arith.truncf %28 : vector<64x128xf32> to vector<64x128xbf16>
    %c0_18 = arith.constant 0 : index
    %c0_19 = arith.constant 0 : index
    %30 = vector.load %arg9[%c0_18, %c0_19] : memref<64x128xbf16, #tpu.memory_space<vmem>>, vector<64x128xbf16>
    tpu.vector_store %arg9[%c0_18, %c0_19], %29 {strides = array<i32>} : memref<64x128xbf16, #tpu.memory_space<vmem>>, vector<64x128xbf16>,
    return
  }
  func.func @transform_0(%arg0: i32) -> i32 {
    %c0_i32 = arith.constant 0 : i32
    %c0_i32_0 = arith.constant 0 : i32
    return %c0_i32 : i32
  }
  func.func @transform_1(%arg0: i32) -> (i32, i32) {
    %c0_i32 = arith.constant 0 : i32
    %c0_i32_0 = arith.constant 0 : i32
    return %arg0, %c0_i32 : i32, i32
  }
  func.func @transform_2(%arg0: i32) -> (i32, i32) {
    %c0_i32 = arith.constant 0 : i32
    %c0_i32_0 = arith.constant 0 : i32
    %c0_i32_1 = arith.constant 0 : i32
    return %c0_i32, %c0_i32_0 : i32, i32
  }
  func.func @transform_3(%arg0: i32) -> (i32, i32) {
    %c0_i32 = arith.constant 0 : i32
    %c0_i32_0 = arith.constant 0 : i32
    %c0_i32_1 = arith.constant 0 : i32
    return %c0_i32, %c0_i32_0 : i32, i32
  }
  func.func @transform_4(%arg0: i32) -> (i32, i32) {
    %c0_i32 = arith.constant 0 : i32
    %c0_i32_0 = arith.constant 0 : i32
    %c0_i32_1 = arith.constant 0 : i32
    return %c0_i32, %c0_i32_0 : i32, i32
  }
  func.func @transform_5(%arg0: i32) -> (i32, i32) {
    %c0_i32 = arith.constant 0 : i32
    %c0_i32_0 = arith.constant 0 : i32
    %c0_i32_1 = arith.constant 0 : i32
    return %c0_i32, %c0_i32_0 : i32, i32
  }
  func.func @transform_6(%arg0: i32) -> (i32, i32) {
    %c0_i32 = arith.constant 0 : i32
    %c0_i32_0 = arith.constant 0 : i32
    %c0_i32_1 = arith.constant 0 : i32
    return %c0_i32, %c0_i32_0 : i32, i32
  }
  func.func @transform_7(%arg0: i32) -> (i32, i32) {
    %c0_i32 = arith.constant 0 : i32
    %c0_i32_0 = arith.constant 0 : i32
    %c0_i32_1 = arith.constant 0 : i32
    return %c0_i32, %c0_i32_0 : i32, i32
  }
  func.func @transform_8(%arg0: i32) -> (i32, i32) {
    %c0_i32 = arith.constant 0 : i32
    %c0_i32_0 = arith.constant 0 : i32
    return %arg0, %c0_i32 : i32, i32
  }
}

</mosaic_0001>

<llo_original>
// kernel: tpu_custom_call.1
$region0: #{tpu_custom_call.1}
  #allocation0 [shape = 'u32[]', space=smem, size = 0x4, offset = 0x4, fixed_abs, tag = 'smem constant byte address 0x4 - core index']
  #allocation1 [shape = 'u32[144,128]{1,0:T(1,128)}', space=vmem, size = 0x12000, scoped, tag = 'internal scratch']
  #allocation2 [shape = 'f32[1]{0:T(128)S(6)}', space=smem, size = 0x200, scoped, tag = 'scoped memory for tpu_custom_call.1']
  %s0 = inlined_call_operand.<no memory space> [shape: f32[1], index: 0, kind: input, shape index: {}]
  %s1 = inlined_call_operand.vmem [shape: f32[64,17], index: 1, kind: input, shape index: {}]
  %s2 = inlined_call_operand.vmem [shape: bf16[17,256], index: 2, kind: input, shape index: {}]
  %s3 = inlined_call_operand.vmem [shape: f32[1,256], index: 3, kind: input, shape index: {}]
  %s4 = inlined_call_operand.hbm [shape: bf16[256,256], index: 4, kind: input, shape index: {}]
  %s5 = inlined_call_operand.vmem [shape: f32[1,256], index: 5, kind: input, shape index: {}]
  %s6 = inlined_call_operand.hbm [shape: bf16[256,128], index: 6, kind: input, shape index: {}]
  %s7 = inlined_call_operand.vmem [shape: f32[1,128], index: 7, kind: input, shape index: {}]
  %s8 = inlined_call_operand.hbm [shape: bf16[64,128], index: 8, kind: output, shape index: {}]
  %s9 = sld [smem:[#allocation0]]
  $region50: #{tpu_custom_call.1} parent=0
    _
  %s11 = ssub.s32 1, %s9
  %s12 = scalar_select 0, %s11, %s9
  %13 = sst [smem:[#allocation2]] %s0
  $region1: #{tpu_custom_call.1} parent=0
    #allocation3 [shape = 'u8[131072]{0}', space=vmem, size = 0x20000, scoped, tag = 'input window, operand 4, single buffered']
    #allocation4 [shape = 's32[1]{0}', space=sflag, size = 0x4, scoped, tag = 'scoped memory for tpu_custom_call.1']
    #allocation5 [shape = 's32[1]{0}', space=sflag, size = 0x4, scoped, tag = 'scoped memory for tpu_custom_call.1']
    #allocation6 [shape = 'u8[65536]{0}', space=vmem, size = 0x10000, scoped, tag = 'input window, operand 6, single buffered']
    #allocation7 [shape = 's32[1]{0}', space=sflag, size = 0x4, scoped, tag = 'scoped memory for tpu_custom_call.1']
    #allocation8 [shape = 'u8[16384]{0}', space=vmem, size = 0x4000, scoped, tag = 'output window, operand 0, single buffered']
    %14 = vsyncpa [#allocation4], 0
    %15 = vsyncpa [#allocation7], 0
    %16 = vsyncpa [#allocation5], 0
    // Predicated region
    $region2: #{tpu_custom_call.1} parent=1 // pred_check
      _
    $region3: #{tpu_custom_call.1} parent=1 // pred_check_branch
      %18 = sbr.rel (0) target = $region5
    $region4: #{tpu_custom_call.1} parent=1 // pred_region
      _
    $region5: #{tpu_custom_call.1} parent=1 // pred_fallthru
      _
    // Predicated region
    $region6: #{tpu_custom_call.1} parent=1 // pred_check
      _
    $region7: #{tpu_custom_call.1} parent=1 // pred_check_branch
      %20 = sbr.rel (0) target = $region9
    $region8: #{tpu_custom_call.1} parent=1 // pred_region
      _
    $region9: #{tpu_custom_call.1} parent=1 // pred_fallthru
      _
    // Predicated region
    $region10: #{tpu_custom_call.1} parent=1 // pred_check
      _
    $region11: #{tpu_custom_call.1} parent=1 // pred_check_branch
      %22 = sbr.rel (0) target = $region13
    $region12: #{tpu_custom_call.1} parent=1 // pred_region
      _
    $region13: #{tpu_custom_call.1} parent=1 // pred_fallthru
      _
    // Predicated region
    $region14: #{tpu_custom_call.1} parent=1 // pred_check
      _
    $region15: #{tpu_custom_call.1} parent=1 // pred_check_branch
      %24 = sbr.rel (0) target = $region17
    $region16: #{tpu_custom_call.1} parent=1 // pred_region
      _
    $region17: #{tpu_custom_call.1} parent=1 // pred_fallthru
      _
    // Predicated region
    $region18: #{tpu_custom_call.1} parent=1 // pred_check
      _
    $region19: #{tpu_custom_call.1} parent=1 // pred_check_branch
      %26 = sbr.rel (0) target = $region21
    $region20: #{tpu_custom_call.1} parent=1 // pred_region
      %s28 = ssub.s32 4096, 4096
      %29 = vsyncadd [#allocation4], %s28
      %s30 = sshll.u32 [#allocation3], 4
      %s31 = int_to_ptr.vmem [resolvable:$true] %s30
      %36 = dma.hbm_to_vmem [thread:$0]  %s4, 4096, %s31, [#allocation4], 128, 128, 8
    $region21: #{tpu_custom_call.1} parent=1 // pred_fallthru
      _
    // Predicated region
    $region22: #{tpu_custom_call.1} parent=1 // pred_check
      _
    $region23: #{tpu_custom_call.1} parent=1 // pred_check_branch
      %38 = sbr.rel (0) target = $region25
    $region24: #{tpu_custom_call.1} parent=1 // pred_region
      _
    $region25: #{tpu_custom_call.1} parent=1 // pred_fallthru
      _
    // Predicated region
    $region26: #{tpu_custom_call.1} parent=1 // pred_check
      _
    $region27: #{tpu_custom_call.1} parent=1 // pred_check_branch
      %40 = sbr.rel (0) target = $region29
    $region28: #{tpu_custom_call.1} parent=1 // pred_region
      %s42 = ssub.s32 2048, 2048
      %43 = vsyncadd [#allocation7], %s42
      %s44 = sshll.u32 [#allocation6], 4
      %s45 = int_to_ptr.vmem [resolvable:$true] %s44
      %50 = dma.hbm_to_vmem [thread:$0]  %s6, 2048, %s45, [#allocation7], 64, 64, 4
    $region29: #{tpu_custom_call.1} parent=1 // pred_fallthru
      _
    // Predicated region
    $region30: #{tpu_custom_call.1} parent=1 // pred_check
      _
    $region31: #{tpu_custom_call.1} parent=1 // pred_check_branch
      %52 = sbr.rel (0) target = $region33
    $region32: #{tpu_custom_call.1} parent=1 // pred_region
      _
    $region33: #{tpu_custom_call.1} parent=1 // pred_fallthru
      _
    // Predicated region
    $region34: #{tpu_custom_call.1} parent=1 // pred_check
      _
    $region35: #{tpu_custom_call.1} parent=1 // pred_check_branch
      %54 = sbr.rel (0) target = $region37
    $region36: #{tpu_custom_call.1} parent=1 // pred_region
      %55 = dma.done [#allocation4], 4096
    $region37: #{tpu_custom_call.1} parent=1 // pred_fallthru
      _
    // Predicated region
    $region38: #{tpu_custom_call.1} parent=1 // pred_check
      _
    $region39: #{tpu_custom_call.1} parent=1 // pred_check_branch
      %57 = sbr.rel (0) target = $region41
    $region40: #{tpu_custom_call.1} parent=1 // pred_region
      %58 = dma.done [#allocation7], 2048
    $region41: #{tpu_custom_call.1} parent=1 // pred_fallthru
      _
    %s60 = sld [smem:[#allocation2]]
    %v61 = vld [vmem:[%s1] sm:$0xff]
    %v62 = vld [vmem:[%s1 + $0x8] sm:$0xff]
    %v63 = vld [vmem:[%s1 + $0x10] sm:$0xff]
    %v64 = vld [vmem:[%s1 + $0x18] sm:$0xff]
    %v65 = vld [vmem:[%s1 + $0x20] sm:$0xff]
    %v66 = vld [vmem:[%s1 + $0x28] sm:$0xff]
    %v67 = vld [vmem:[%s1 + $0x30] sm:$0xff]
    %v68 = vld [vmem:[%s1 + $0x38] sm:$0xff]
    %v69 = vpack.c.bf16 %v62, %v61
    %v70 = vpack.c.bf16 %v64, %v63
    %v71 = vpack.c.bf16 %v66, %v65
    %v72 = vpack.c.bf16 %v68, %v67
    %v73 = vld [vmem:[%s2] sm:$0xff]
    %v74 = vld [vmem:[%s2 + $0x8] sm:$0xff]
    %v75 = vld [vmem:[%s2 + $0x10] sm:$0x11]
    %v76 = vld [vmem:[%s3] sm:$0x3]
    %v78 = vlaneseq
    %v79 = vshrl.u32 %v78, 7
    %v80 = vsub.s32 0, %v79
    %v81 = vrot.slane %v76, %v80
    %v82 = vlaneseq
    %v83 = vshrl.u32 %v82, 7
    %v84 = vsub.s32 1, %v83
    %v85 = vrot.slane %v76, %v84
    %v91 = vunpack.c.l.b16 %v73
    %v92 = vunpack.c.h.b16 %v73
    %v93 = vunpack.c.l.b16 %v74
    %v94 = vunpack.c.h.b16 %v74
    %v95 = vunpack.c.l.b16 %v75
    %v96 = vunpack.c.h.b16 %v75
    %v97 = vpack.c.b16 %v93, %v91
    %v98 = vpack.c.b16 %v94, %v92
    %v99 = vpack.c.b16 %v95, %v95
    %v100 = vpack.c.b16 %v96, %v96
    %vm103 = vcmask 138240
    %v105 = vsel %vm103, %v69, 0
    %v108 = vsel %vm103, %v70, 0
    %v111 = vsel %vm103, %v71, 0
    %v114 = vsel %vm103, %v72, 0
    %vm116 = vcmask 1040384
    %v117 = vsel 0, 4294967295, 65535
    %v118 = vsel %vm116, %v117, 0
    %v120 = vand.u32 %v99, %v118
    %v123 = vand.u32 %v100, %v118
    %125 = vmatprep.subr.bf16.mxu0 0
    %126 = vmatpush1.bf16.msra.mxu0 0
    %127 = vmatprep.subr.bf16.mxu0 0
    %128 = vmatpush1.bf16.msra.mxu0 0
    %129 = vmatprep.subr.bf16.mxu0 0
    %130 = vmatpush1.bf16.msra.mxu0 0
    %131 = vmatprep.subr.bf16.mxu0 0
    %132 = vmatpush1.bf16.msra.mxu0 0
    %133 = vmatprep.subr.bf16.mxu0 0
    %134 = vmatpush1.bf16.msra.mxu0 0
    %135 = vmatprep.subr.bf16.mxu0 0
    %136 = vmatpush1.bf16.msra.mxu0 0
    %137 = vmatprep.subr.bf16.mxu0 %v123
    %138 = vmatpush1.bf16.msra.mxu0 %v120
    %139 = vmatprep.subr.bf16.mxu0 %v98
    %140 = vmatpush1.bf16.msra.mxu0 %v97
    %141 = vmatprep.subr.bf16.mxu0 0
    %142 = vmatpush2.bf16.msra.mxu0 0
    %143 = vmatprep.subr.bf16.mxu0 0
    %144 = vmatpush2.bf16.msra.mxu0 0
    %145 = vmatprep.subr.bf16.mxu0 0
    %146 = vmatpush2.bf16.msra.mxu0 0
    %147 = vmatprep.subr.bf16.mxu0 0
    %148 = vmatpush2.bf16.msra.mxu0 0
    %149 = vmatprep.subr.bf16.mxu0 0
    %150 = vmatpush2.bf16.msra.mxu0 0
    %151 = vmatprep.subr.bf16.mxu0 0
    %152 = vmatpush2.bf16.msra.mxu0 0
    %153 = vmatprep.subr.bf16.mxu0 0
    %154 = vmatpush2.bf16.msra.mxu0 0
    %155 = vmatprep.subr.bf16.mxu0 0
    %156 = vmatpush2.bf16.msra.mxu0 0
    %157 = vmatprep.mubr.bf16.mxu0 0
    %158 = vmatmul.mubr.bf16.gmra.mxu0 %v105
    %v159 = vpop.f32.mrf.mxu0
    %v160 = vadd.f32 %v81, %v159
    %v161 = vpop.f32.mrf.mxu0
    %v162 = vadd.f32 %v85, %v161
    %v163 = vpop.f32.mrf.mxu0
    %v164 = vadd.f32 %v81, %v163
    %v165 = vpop.f32.mrf.mxu0
    %v166 = vadd.f32 %v85, %v165
    %167 = vmatprep.mubr.bf16.mxu0 0
    %168 = vmatmul.mubr.bf16.gmra.mxu0 %v108
    %v169 = vpop.f32.mrf.mxu0
    %v170 = vadd.f32 %v81, %v169
    %v171 = vpop.f32.mrf.mxu0
    %v172 = vadd.f32 %v85, %v171
    %v173 = vpop.f32.mrf.mxu0
    %v174 = vadd.f32 %v81, %v173
    %v175 = vpop.f32.mrf.mxu0
    %v176 = vadd.f32 %v85, %v175
    %177 = vmatprep.mubr.bf16.mxu0 0
    %178 = vmatmul.mubr.bf16.gmra.mxu0 %v111
    %v179 = vpop.f32.mrf.mxu0
    %v180 = vadd.f32 %v81, %v179
    %v181 = vpop.f32.mrf.mxu0
    %v182 = vadd.f32 %v85, %v181
    %v183 = vpop.f32.mrf.mxu0
    %v184 = vadd.f32 %v81, %v183
    %v185 = vpop.f32.mrf.mxu0
    %v186 = vadd.f32 %v85, %v185
    %187 = vmatprep.mubr.bf16.mxu0 0
    %188 = vmatmul.mubr.bf16.gmra.mxu0 %v114
    %v189 = vpop.f32.mrf.mxu0
    %v190 = vadd.f32 %v81, %v189
    %v191 = vpop.f32.mrf.mxu0
    %v192 = vadd.f32 %v85, %v191
    %v193 = vpop.f32.mrf.mxu0
    %v194 = vadd.f32 %v81, %v193
    %v195 = vpop.f32.mrf.mxu0
    %v196 = vadd.f32 %v85, %v195
    %197 = vdwg.mxu0
    %v198 = vmax.f32 %v160, 0.0
    %v199 = vmax.f32 %v162, 0.0
    %v200 = vmax.f32 %v164, 0.0
    %v201 = vmax.f32 %v166, 0.0
    %v202 = vmax.f32 %v170, 0.0
    %v203 = vmax.f32 %v172, 0.0
    %v204 = vmax.f32 %v174, 0.0
    %v205 = vmax.f32 %v176, 0.0
    %v206 = vmax.f32 %v180, 0.0
    %v207 = vmax.f32 %v182, 0.0
    %v208 = vmax.f32 %v184, 0.0
    %v209 = vmax.f32 %v186, 0.0
    %v210 = vmax.f32 %v190, 0.0
    %v211 = vmax.f32 %v192, 0.0
    %v212 = vmax.f32 %v194, 0.0
    %v213 = vmax.f32 %v196, 0.0
    %v214 = vpack.c.bf16 %v200, %v198
    %v215 = vpack.c.bf16 %v201, %v199
    %v216 = vpack.c.bf16 %v204, %v202
    %v217 = vpack.c.bf16 %v205, %v203
    %v218 = vpack.c.bf16 %v208, %v206
    %v219 = vpack.c.bf16 %v209, %v207
    %v220 = vpack.c.bf16 %v212, %v210
    %v221 = vpack.c.bf16 %v213, %v211
    %v222 = vld [vmem:[#allocation3] sm:$0xff]
    %v223 = vld [vmem:[#allocation3 + $0x8] sm:$0xff]
    %v224 = vld [vmem:[#allocation3 + $0x10] sm:$0xff]
    %v225 = vld [vmem:[#allocation3 + $0x18] sm:$0xff]
    %v226 = vld [vmem:[#allocation3 + $0x20] sm:$0xff]
    %v227 = vld [vmem:[#allocation3 + $0x28] sm:$0xff]
    %v228 = vld [vmem:[#allocation3 + $0x30] sm:$0xff]
    %v229 = vld [vmem:[#allocation3 + $0x38] sm:$0xff]
    %v230 = vld [vmem:[#allocation3 + $0x40] sm:$0xff]
    %v231 = vld [vmem:[#allocation3 + $0x48] sm:$0xff]
    %v232 = vld [vmem:[#allocation3 + $0x50] sm:$0xff]
    %v233 = vld [vmem:[#allocation3 + $0x58] sm:$0xff]
    %v234 = vld [vmem:[#allocation3 + $0x60] sm:$0xff]
    %v235 = vld [vmem:[#allocation3 + $0x68] sm:$0xff]
    %v236 = vld [vmem:[#allocation3 + $0x70] sm:$0xff]
    %v237 = vld [vmem:[#allocation3 + $0x78] sm:$0xff]
    %v238 = vld [vmem:[#allocation3 + $0x80] sm:$0xff]
    %v239 = vld [vmem:[#allocation3 + $0x88] sm:$0xff]
    %v240 = vld [vmem:[#allocation3 + $0x90] sm:$0xff]
    %v241 = vld [vmem:[#allocation3 + $0x98] sm:$0xff]
    %v242 = vld [vmem:[#allocation3 + $0xa0] sm:$0xff]
    %v243 = vld [vmem:[#allocation3 + $0xa8] sm:$0xff]
    %v244 = vld [vmem:[#allocation3 + $0xb0] sm:$0xff]
    %v245 = vld [vmem:[#allocation3 + $0xb8] sm:$0xff]
    %v246 = vld [vmem:[#allocation3 + $0xc0] sm:$0xff]
    %v247 = vld [vmem:[#allocation3 + $0xc8] sm:$0xff]
    %v248 = vld [vmem:[#allocation3 + $0xd0] sm:$0xff]
    %v249 = vld [vmem:[#allocation3 + $0xd8] sm:$0xff]
    %v250 = vld [vmem:[#allocation3 + $0xe0] sm:$0xff]
    %v251 = vld [vmem:[#allocation3 + $0xe8] sm:$0xff]
    %v252 = vld [vmem:[#allocation3 + $0xf0] sm:$0xff]
    %v253 = vld [vmem:[#allocation3 + $0xf8] sm:$0xff]
    %v254 = vld [vmem:[%s5] sm:$0x3]
    %v256 = vlaneseq
    %v257 = vshrl.u32 %v256, 7
    %v258 = vsub.s32 0, %v257
    %v259 = vrot.slane %v254, %v258
    %v260 = vlaneseq
    %v261 = vshrl.u32 %v260, 7
    %v262 = vsub.s32 1, %v261
    %v263 = vrot.slane %v254, %v262
    %v298 = vunpack.c.l.b16 %v222
    %v299 = vunpack.c.h.b16 %v222
    %v300 = vunpack.c.l.b16 %v223
    %v301 = vunpack.c.h.b16 %v223
    %v302 = vunpack.c.l.b16 %v224
    %v303 = vunpack.c.h.b16 %v224
    %v304 = vunpack.c.l.b16 %v225
    %v305 = vunpack.c.h.b16 %v225
    %v306 = vunpack.c.l.b16 %v226
    %v307 = vunpack.c.h.b16 %v226
    %v308 = vunpack.c.l.b16 %v227
    %v309 = vunpack.c.h.b16 %v227
    %v310 = vunpack.c.l.b16 %v228
    %v311 = vunpack.c.h.b16 %v228
    %v312 = vunpack.c.l.b16 %v229
    %v313 = vunpack.c.h.b16 %v229
    %v314 = vunpack.c.l.b16 %v230
    %v315 = vunpack.c.h.b16 %v230
    %v316 = vunpack.c.l.b16 %v231
    %v317 = vunpack.c.h.b16 %v231
    %v318 = vunpack.c.l.b16 %v232
    %v319 = vunpack.c.h.b16 %v232
    %v320 = vunpack.c.l.b16 %v233
    %v321 = vunpack.c.h.b16 %v233
    %v322 = vunpack.c.l.b16 %v234
    %v323 = vunpack.c.h.b16 %v234
    %v324 = vunpack.c.l.b16 %v235
    %v325 = vunpack.c.h.b16 %v235
    %v326 = vunpack.c.l.b16 %v236
    %v327 = vunpack.c.h.b16 %v236
    %v328 = vunpack.c.l.b16 %v237
    %v329 = vunpack.c.h.b16 %v237
    %v330 = vunpack.c.l.b16 %v238
    %v331 = vunpack.c.h.b16 %v238
    %v332 = vunpack.c.l.b16 %v239
    %v333 = vunpack.c.h.b16 %v239
    %v334 = vunpack.c.l.b16 %v240
    %v335 = vunpack.c.h.b16 %v240
    %v336 = vunpack.c.l.b16 %v241
    %v337 = vunpack.c.h.b16 %v241
    %v338 = vunpack.c.l.b16 %v242
    %v339 = vunpack.c.h.b16 %v242
    %v340 = vunpack.c.l.b16 %v243
    %v341 = vunpack.c.h.b16 %v243
    %v342 = vunpack.c.l.b16 %v244
    %v343 = vunpack.c.h.b16 %v244
    %v344 = vunpack.c.l.b16 %v245
    %v345 = vunpack.c.h.b16 %v245
    %v346 = vunpack.c.l.b16 %v246
    %v347 = vunpack.c.h.b16 %v246
    %v348 = vunpack.c.l.b16 %v247
    %v349 = vunpack.c.h.b16 %v247
    %v350 = vunpack.c.l.b16 %v248
    %v351 = vunpack.c.h.b16 %v248
    %v352 = vunpack.c.l.b16 %v249
    %v353 = vunpack.c.h.b16 %v249
    %v354 = vunpack.c.l.b16 %v250
    %v355 = vunpack.c.h.b16 %v250
    %v356 = vunpack.c.l.b16 %v251
    %v357 = vunpack.c.h.b16 %v251
    %v358 = vunpack.c.l.b16 %v252
    %v359 = vunpack.c.h.b16 %v252
    %v360 = vunpack.c.l.b16 %v253
    %v361 = vunpack.c.h.b16 %v253
    %v362 = vpack.c.b16 %v300, %v298
    %v363 = vpack.c.b16 %v301, %v299
    %v364 = vpack.c.b16 %v304, %v302
    %v365 = vpack.c.b16 %v305, %v303
    %v366 = vpack.c.b16 %v308, %v306
    %v367 = vpack.c.b16 %v309, %v307
    %v368 = vpack.c.b16 %v312, %v310
    %v369 = vpack.c.b16 %v313, %v311
    %v370 = vpack.c.b16 %v316, %v314
    %v371 = vpack.c.b16 %v317, %v315
    %v372 = vpack.c.b16 %v320, %v318
    %v373 = vpack.c.b16 %v321, %v319
    %v374 = vpack.c.b16 %v324, %v322
    %v375 = vpack.c.b16 %v325, %v323
    %v376 = vpack.c.b16 %v328, %v326
    %v377 = vpack.c.b16 %v329, %v327
    %v378 = vpack.c.b16 %v332, %v330
    %v379 = vpack.c.b16 %v333, %v331
    %v380 = vpack.c.b16 %v336, %v334
    %v381 = vpack.c.b16 %v337, %v335
    %v382 = vpack.c.b16 %v340, %v338
    %v383 = vpack.c.b16 %v341, %v339
    %v384 = vpack.c.b16 %v344, %v342
    %v385 = vpack.c.b16 %v345, %v343
    %v386 = vpack.c.b16 %v348, %v346
    %v387 = vpack.c.b16 %v349, %v347
    %v388 = vpack.c.b16 %v352, %v350
    %v389 = vpack.c.b16 %v353, %v351
    %v390 = vpack.c.b16 %v356, %v354
    %v391 = vpack.c.b16 %v357, %v355
    %v392 = vpack.c.b16 %v360, %v358
    %v393 = vpack.c.b16 %v361, %v359
    %426 = vmatprep.subr.bf16.mxu0 %v377
    %427 = vmatpush1.bf16.msra.mxu0 %v376
    %428 = vmatprep.subr.bf16.mxu0 %v375
    %429 = vmatpush1.bf16.msra.mxu0 %v374
    %430 = vmatprep.subr.bf16.mxu0 %v373
    %431 = vmatpush1.bf16.msra.mxu0 %v372
    %432 = vmatprep.subr.bf16.mxu0 %v371
    %433 = vmatpush1.bf16.msra.mxu0 %v370
    %434 = vmatprep.subr.bf16.mxu0 %v369
    %435 = vmatpush1.bf16.msra.mxu0 %v368
    %436 = vmatprep.subr.bf16.mxu0 %v367
    %437 = vmatpush1.bf16.msra.mxu0 %v366
    %438 = vmatprep.subr.bf16.mxu0 %v365
    %439 = vmatpush1.bf16.msra.mxu0 %v364
    %440 = vmatprep.subr.bf16.mxu0 %v363
    %441 = vmatpush1.bf16.msra.mxu0 %v362
    %442 = vmatprep.subr.bf16.mxu0 %v393
    %443 = vmatpush2.bf16.msra.mxu0 %v392
    %444 = vmatprep.subr.bf16.mxu0 %v391
    %445 = vmatpush2.bf16.msra.mxu0 %v390
    %446 = vmatprep.subr.bf16.mxu0 %v389
    %447 = vmatpush2.bf16.msra.mxu0 %v388
    %448 = vmatprep.subr.bf16.mxu0 %v387
    %449 = vmatpush2.bf16.msra.mxu0 %v386
    %450 = vmatprep.subr.bf16.mxu0 %v385
    %451 = vmatpush2.bf16.msra.mxu0 %v384
    %452 = vmatprep.subr.bf16.mxu0 %v383
    %453 = vmatpush2.bf16.msra.mxu0 %v382
    %454 = vmatprep.subr.bf16.mxu0 %v381
    %455 = vmatpush2.bf16.msra.mxu0 %v380
    %456 = vmatprep.subr.bf16.mxu0 %v379
    %457 = vmatpush2.bf16.msra.mxu0 %v378
    %458 = vmatprep.mubr.bf16.mxu0 %v215
    %459 = vmatmul.mubr.bf16.gmra.mxu0 %v214
    %v460 = vpop.f32.mrf.mxu0
    %v461 = vadd.f32 %v259, %v460
    %v462 = vpop.f32.mrf.mxu0
    %v463 = vadd.f32 %v263, %v462
    %v464 = vpop.f32.mrf.mxu0
    %v465 = vadd.f32 %v259, %v464
    %v466 = vpop.f32.mrf.mxu0
    %v467 = vadd.f32 %v263, %v466
    %468 = vmatprep.mubr.bf16.mxu0 %v217
    %469 = vmatmul.mubr.bf16.gmra.mxu0 %v216
    %v470 = vpop.f32.mrf.mxu0
    %v471 = vadd.f32 %v259, %v470
    %v472 = vpop.f32.mrf.mxu0
    %v473 = vadd.f32 %v263, %v472
    %v474 = vpop.f32.mrf.mxu0
    %v475 = vadd.f32 %v259, %v474
    %v476 = vpop.f32.mrf.mxu0
    %v477 = vadd.f32 %v263, %v476
    %478 = vmatprep.mubr.bf16.mxu0 %v219
    %479 = vmatmul.mubr.bf16.gmra.mxu0 %v218
    %v480 = vpop.f32.mrf.mxu0
    %v481 = vadd.f32 %v259, %v480
    %v482 = vpop.f32.mrf.mxu0
    %v483 = vadd.f32 %v263, %v482
    %v484 = vpop.f32.mrf.mxu0
    %v485 = vadd.f32 %v259, %v484
    %v486 = vpop.f32.mrf.mxu0
    %v487 = vadd.f32 %v263, %v486
    %488 = vmatprep.mubr.bf16.mxu0 %v221
    %489 = vmatmul.mubr.bf16.gmra.mxu0 %v220
    %v490 = vpop.f32.mrf.mxu0
    %v491 = vadd.f32 %v259, %v490
    %v492 = vpop.f32.mrf.mxu0
    %v493 = vadd.f32 %v263, %v492
    %v494 = vpop.f32.mrf.mxu0
    %v495 = vadd.f32 %v259, %v494
    %v496 = vpop.f32.mrf.mxu0
    %v497 = vadd.f32 %v263, %v496
    %498 = vdwg.mxu0
    %v499 = vmax.f32 %v461, 0.0
    %v500 = vmax.f32 %v463, 0.0
    %v501 = vmax.f32 %v465, 0.0
    %v502 = vmax.f32 %v467, 0.0
    %v503 = vmax.f32 %v471, 0.0
    %v504 = vmax.f32 %v473, 0.0
    %v505 = vmax.f32 %v475, 0.0
    %v506 = vmax.f32 %v477, 0.0
    %v507 = vmax.f32 %v481, 0.0
    %v508 = vmax.f32 %v483, 0.0
    %v509 = vmax.f32 %v485, 0.0
    %v510 = vmax.f32 %v487, 0.0
    %v511 = vmax.f32 %v491, 0.0
    %v512 = vmax.f32 %v493, 0.0
    %v513 = vmax.f32 %v495, 0.0
    %v514 = vmax.f32 %v497, 0.0
    %v515 = vunpack.c.l.bf16 %v214
    %v516 = vunpack.c.l.bf16 %v215
    %v517 = vunpack.c.h.bf16 %v214
    %v518 = vunpack.c.h.bf16 %v215
    %v519 = vunpack.c.l.bf16 %v216
    %v520 = vunpack.c.l.bf16 %v217
    %v521 = vunpack.c.h.bf16 %v216
    %v522 = vunpack.c.h.bf16 %v217
    %v523 = vunpack.c.l.bf16 %v218
    %v524 = vunpack.c.l.bf16 %v219
    %v525 = vunpack.c.h.bf16 %v218
    %v526 = vunpack.c.h.bf16 %v219
    %v527 = vunpack.c.l.bf16 %v220
    %v528 = vunpack.c.l.bf16 %v221
    %v529 = vunpack.c.h.bf16 %v220
    %v530 = vunpack.c.h.bf16 %v221
    %v531 = vadd.f32 %v515, %v499
    %v532 = vadd.f32 %v516, %v500
    %v533 = vadd.f32 %v517, %v501
    %v534 = vadd.f32 %v518, %v502
    %v535 = vadd.f32 %v519, %v503
    %v536 = vadd.f32 %v520, %v504
    %v537 = vadd.f32 %v521, %v505
    %v538 = vadd.f32 %v522, %v506
    %v539 = vadd.f32 %v523, %v507
    %v540 = vadd.f32 %v524, %v508
    %v541 = vadd.f32 %v525, %v509
    %v542 = vadd.f32 %v526, %v510
    %v543 = vadd.f32 %v527, %v511
    %v544 = vadd.f32 %v528, %v512
    %v545 = vadd.f32 %v529, %v513
    %v546 = vadd.f32 %v530, %v514
    %v547 = vpack.c.bf16 %v533, %v531
    %v548 = vpack.c.bf16 %v534, %v532
    %v549 = vpack.c.bf16 %v537, %v535
    %v550 = vpack.c.bf16 %v538, %v536
    %v551 = vpack.c.bf16 %v541, %v539
    %v552 = vpack.c.bf16 %v542, %v540
    %v553 = vpack.c.bf16 %v545, %v543
    %v554 = vpack.c.bf16 %v546, %v544
    %v555 = vld [vmem:[#allocation6] sm:$0xf]
    %v556 = vld [vmem:[#allocation6 + $0x4] sm:$0xf]
    %v557 = vld [vmem:[#allocation6 + $0x8] sm:$0xf]
    %v558 = vld [vmem:[#allocation6 + $0xc] sm:$0xf]
    %v559 = vld [vmem:[#allocation6 + $0x10] sm:$0xf]
    %v560 = vld [vmem:[#allocation6 + $0x14] sm:$0xf]
    %v561 = vld [vmem:[#allocation6 + $0x18] sm:$0xf]
    %v562 = vld [vmem:[#allocation6 + $0x1c] sm:$0xf]
    %v563 = vld [vmem:[#allocation6 + $0x20] sm:$0xf]
    %v564 = vld [vmem:[#allocation6 + $0x24] sm:$0xf]
    %v565 = vld [vmem:[#allocation6 + $0x28] sm:$0xf]
    %v566 = vld [vmem:[#allocation6 + $0x2c] sm:$0xf]
    %v567 = vld [vmem:[#allocation6 + $0x30] sm:$0xf]
    %v568 = vld [vmem:[#allocation6 + $0x34] sm:$0xf]
    %v569 = vld [vmem:[#allocation6 + $0x38] sm:$0xf]
    %v570 = vld [vmem:[#allocation6 + $0x3c] sm:$0xf]
    %v571 = vld [vmem:[#allocation6 + $0x40] sm:$0xf]
    %v572 = vld [vmem:[#allocation6 + $0x44] sm:$0xf]
    %v573 = vld [vmem:[#allocation6 + $0x48] sm:$0xf]
    %v574 = vld [vmem:[#allocation6 + $0x4c] sm:$0xf]
    %v575 = vld [vmem:[#allocation6 + $0x50] sm:$0xf]
    %v576 = vld [vmem:[#allocation6 + $0x54] sm:$0xf]
    %v577 = vld [vmem:[#allocation6 + $0x58] sm:$0xf]
    %v578 = vld [vmem:[#allocation6 + $0x5c] sm:$0xf]
    %v579 = vld [vmem:[#allocation6 + $0x60] sm:$0xf]
    %v580 = vld [vmem:[#allocation6 + $0x64] sm:$0xf]
    %v581 = vld [vmem:[#allocation6 + $0x68] sm:$0xf]
    %v582 = vld [vmem:[#allocation6 + $0x6c] sm:$0xf]
    %v583 = vld [vmem:[#allocation6 + $0x70] sm:$0xf]
    %v584 = vld [vmem:[#allocation6 + $0x74] sm:$0xf]
    %v585 = vld [vmem:[#allocation6 + $0x78] sm:$0xf]
    %v586 = vld [vmem:[#allocation6 + $0x7c] sm:$0xf]
    %v587 = vld [vmem:[%s7] sm:$0x1]
    %v589 = vlaneseq
    %v590 = vshrl.u32 %v589, 7
    %v591 = vsub.s32 0, %v590
    %v592 = vrot.slane %v587, %v591
    %v626 = vunpack.c.l.b16 %v555
    %v627 = vunpack.c.l.b16 %v556
    %v628 = vunpack.c.l.b16 %v557
    %v629 = vunpack.c.l.b16 %v558
    %v630 = vunpack.c.l.b16 %v559
    %v631 = vunpack.c.l.b16 %v560
    %v632 = vunpack.c.l.b16 %v561
    %v633 = vunpack.c.l.b16 %v562
    %v634 = vunpack.c.l.b16 %v563
    %v635 = vunpack.c.l.b16 %v564
    %v636 = vunpack.c.l.b16 %v565
    %v637 = vunpack.c.l.b16 %v566
    %v638 = vunpack.c.l.b16 %v567
    %v639 = vunpack.c.l.b16 %v568
    %v640 = vunpack.c.l.b16 %v569
    %v641 = vunpack.c.l.b16 %v570
    %v642 = vunpack.c.l.b16 %v571
    %v643 = vunpack.c.l.b16 %v572
    %v644 = vunpack.c.l.b16 %v573
    %v645 = vunpack.c.l.b16 %v574
    %v646 = vunpack.c.l.b16 %v575
    %v647 = vunpack.c.l.b16 %v576
    %v648 = vunpack.c.l.b16 %v577
    %v649 = vunpack.c.l.b16 %v578
    %v650 = vunpack.c.l.b16 %v579
    %v651 = vunpack.c.l.b16 %v580
    %v652 = vunpack.c.l.b16 %v581
    %v653 = vunpack.c.l.b16 %v582
    %v654 = vunpack.c.l.b16 %v583
    %v655 = vunpack.c.l.b16 %v584
    %v656 = vunpack.c.l.b16 %v585
    %v657 = vunpack.c.l.b16 %v586
    %v658 = vpack.c.b16 %v627, %v626
    %v659 = vpack.c.b16 %v629, %v628
    %v660 = vpack.c.b16 %v631, %v630
    %v661 = vpack.c.b16 %v633, %v632
    %v662 = vpack.c.b16 %v635, %v634
    %v663 = vpack.c.b16 %v637, %v636
    %v664 = vpack.c.b16 %v639, %v638
    %v665 = vpack.c.b16 %v641, %v640
    %v666 = vpack.c.b16 %v643, %v642
    %v667 = vpack.c.b16 %v645, %v644
    %v668 = vpack.c.b16 %v647, %v646
    %v669 = vpack.c.b16 %v649, %v648
    %v670 = vpack.c.b16 %v651, %v650
    %v671 = vpack.c.b16 %v653, %v652
    %v672 = vpack.c.b16 %v655, %v654
    %v673 = vpack.c.b16 %v657, %v656
    %690 = vmatprep.subr.bf16.mxu0 0
    %691 = vmatpush1.bf16.msra.mxu0 %v665
    %692 = vmatprep.subr.bf16.mxu0 0
    %693 = vmatpush1.bf16.msra.mxu0 %v664
    %694 = vmatprep.subr.bf16.mxu0 0
    %695 = vmatpush1.bf16.msra.mxu0 %v663
    %696 = vmatprep.subr.bf16.mxu0 0
    %697 = vmatpush1.bf16.msra.mxu0 %v662
    %698 = vmatprep.subr.bf16.mxu0 0
    %699 = vmatpush1.bf16.msra.mxu0 %v661
    %700 = vmatprep.subr.bf16.mxu0 0
    %701 = vmatpush1.bf16.msra.mxu0 %v660
    %702 = vmatprep.subr.bf16.mxu0 0
    %703 = vmatpush1.bf16.msra.mxu0 %v659
    %704 = vmatprep.subr.bf16.mxu0 0
    %705 = vmatpush1.bf16.msra.mxu0 %v658
    %706 = vmatprep.subr.bf16.mxu0 0
    %707 = vmatpush2.bf16.msra.mxu0 %v673
    %708 = vmatprep.subr.bf16.mxu0 0
    %709 = vmatpush2.bf16.msra.mxu0 %v672
    %710 = vmatprep.subr.bf16.mxu0 0
    %711 = vmatpush2.bf16.msra.mxu0 %v671
    %712 = vmatprep.subr.bf16.mxu0 0
    %713 = vmatpush2.bf16.msra.mxu0 %v670
    %714 = vmatprep.subr.bf16.mxu0 0
    %715 = vmatpush2.bf16.msra.mxu0 %v669
    %716 = vmatprep.subr.bf16.mxu0 0
    %717 = vmatpush2.bf16.msra.mxu0 %v668
    %718 = vmatprep.subr.bf16.mxu0 0
    %719 = vmatpush2.bf16.msra.mxu0 %v667
    %720 = vmatprep.subr.bf16.mxu0 0
    %721 = vmatpush2.bf16.msra.mxu0 %v666
    %722 = vmatprep.mubr.bf16.mxu0 %v548
    %723 = vmatmul.mubr.bf16.gmra.mxu0 %v547
    %v724 = vpop.f32.mrf.mxu0
    %v725 = vadd.f32 %v592, %v724
    %v726 = vpop.f32.mrf.mxu0
    %v727 = vpop.f32.mrf.mxu0
    %v728 = vadd.f32 %v592, %v727
    %v729 = vpop.f32.mrf.mxu0
    %730 = vmatprep.mubr.bf16.mxu0 %v550
    %731 = vmatmul.mubr.bf16.gmra.mxu0 %v549
    %v732 = vpop.f32.mrf.mxu0
    %v733 = vadd.f32 %v592, %v732
    %v734 = vpop.f32.mrf.mxu0
    %v735 = vpop.f32.mrf.mxu0
    %v736 = vadd.f32 %v592, %v735
    %v737 = vpop.f32.mrf.mxu0
    %738 = vmatprep.mubr.bf16.mxu0 %v552
    %739 = vmatmul.mubr.bf16.gmra.mxu0 %v551
    %v740 = vpop.f32.mrf.mxu0
    %v741 = vadd.f32 %v592, %v740
    %v742 = vpop.f32.mrf.mxu0
    %v743 = vpop.f32.mrf.mxu0
    %v744 = vadd.f32 %v592, %v743
    %v745 = vpop.f32.mrf.mxu0
    %746 = vmatprep.mubr.bf16.mxu0 %v554
    %747 = vmatmul.mubr.bf16.gmra.mxu0 %v553
    %v748 = vpop.f32.mrf.mxu0
    %v749 = vadd.f32 %v592, %v748
    %v750 = vpop.f32.mrf.mxu0
    %v751 = vpop.f32.mrf.mxu0
    %v752 = vadd.f32 %v592, %v751
    %v753 = vpop.f32.mrf.mxu0
    %754 = vdwg.mxu0
    %v755 = vtanh.pop %v725
    %v756 = vtanh.pop %v728
    %v757 = vtanh.pop %v733
    %v758 = vtanh.pop %v736
    %v759 = vtanh.pop %v741
    %v760 = vtanh.pop %v744
    %v761 = vtanh.pop %v749
    %v762 = vtanh.pop %v752
    %v763 = vstv %s60
    %v764 = vmul.f32 %v763, %v755
    %v765 = vmul.f32 %v763, %v756
    %v766 = vmul.f32 %v763, %v757
    %v767 = vmul.f32 %v763, %v758
    %v768 = vmul.f32 %v763, %v759
    %v769 = vmul.f32 %v763, %v760
    %v770 = vmul.f32 %v763, %v761
    %v771 = vmul.f32 %v763, %v762
    %v772 = vpack.c.bf16 %v765, %v764
    %v773 = vpack.c.bf16 %v767, %v766
    %v774 = vpack.c.bf16 %v769, %v768
    %v775 = vpack.c.bf16 %v771, %v770
    %v780 = vunpack.c.l.b16 %v772
    %v781 = vunpack.c.h.b16 %v772
    %v782 = vunpack.c.l.b16 %v773
    %v783 = vunpack.c.h.b16 %v773
    %v784 = vunpack.c.l.b16 %v774
    %v785 = vunpack.c.h.b16 %v774
    %v786 = vunpack.c.l.b16 %v775
    %v787 = vunpack.c.h.b16 %v775
    %v788 = vpack.c.b16 %v780, %v780
    %v789 = vpack.c.b16 %v781, %v781
    %v790 = vpack.c.b16 %v782, %v782
    %v791 = vpack.c.b16 %v783, %v783
    %v792 = vpack.c.b16 %v784, %v784
    %v793 = vpack.c.b16 %v785, %v785
    %v794 = vpack.c.b16 %v786, %v786
    %v795 = vpack.c.b16 %v787, %v787
    %804 = vst [vmem:[#allocation8] sm:$0xf] %v788
    %805 = vst [vmem:[#allocation8 + $0x4] sm:$0xf] %v789
    %806 = vst [vmem:[#allocation8 + $0x8] sm:$0xf] %v790
    %807 = vst [vmem:[#allocation8 + $0xc] sm:$0xf] %v791
    %808 = vst [vmem:[#allocation8 + $0x10] sm:$0xf] %v792
    %809 = vst [vmem:[#allocation8 + $0x14] sm:$0xf] %v793
    %810 = vst [vmem:[#allocation8 + $0x18] sm:$0xf] %v794
    %811 = vst [vmem:[#allocation8 + $0x1c] sm:$0xf] %v795
    // Predicated region
    $region42: #{tpu_custom_call.1} parent=1 // pred_check
      _
    $region43: #{tpu_custom_call.1} parent=1 // pred_check_branch
      %813 = sbr.rel (0) target = $region45
    $region44: #{tpu_custom_call.1} parent=1 // pred_region
      %s815 = ssub.s32 512, 512
      %816 = vsyncadd [#allocation5], %s815
      %s817 = sshll.u32 [#allocation8], 4
      %s818 = int_to_ptr.vmem [resolvable:$true] %s817
      %823 = dma.vmem_to_hbm [thread:$0]  %s818, 512, %s8, [#allocation5], 64, 64, 4
    $region45: #{tpu_custom_call.1} parent=1 // pred_fallthru
      _
    // Predicated region
    $region46: #{tpu_custom_call.1} parent=1 // pred_check
      _
    $region47: #{tpu_custom_call.1} parent=1 // pred_check_branch
      %825 = sbr.rel (0) target = $region49
    $region48: #{tpu_custom_call.1} parent=1 // pred_region
      %826 = dma.done [#allocation5], 512
    $region49: #{tpu_custom_call.1} parent=1 // pred_fallthru
      _
    %827 = vsyncpa [#allocation4], 1
    %828 = vsyncpa [#allocation7], 1
    %829 = vsyncpa [#allocation5], 1

</llo_original>
